<compile_context>
chip_gen: v7x
topology: tpu7x:2x2x1
jax: 0.10.0
libtpu: 0.0.40
codegen_flags: <defaults>
</compile_context>

<pallas_src>
import functools

import jax
import jax.numpy as jnp
from jax import lax
from jax.experimental import pallas as pl
from jax.experimental.pallas import tpu as pltpu


def _round_up(x, m):
    return (x + m - 1) // m * m


# ---------------------------------------------------------------------------
# Agg kernel:  out = relu(adj @ xw + b), tiled (TM, TK), K-accumulated in o_ref
# ---------------------------------------------------------------------------
def _gcn_agg_kernel(adj_ref, xw_ref, b_ref, o_ref, *, n_cols, tk, xw_resident,
                    mask_k_tail):
    k = pl.program_id(1)

    @pl.when(k == 0)
    def _():
        # Bias is the accumulator init (saves a separate add at the end).
        o_ref[...] = jnp.broadcast_to(b_ref[...], o_ref.shape)

    a = adj_ref[...]
    if mask_k_tail:
        # adj is NOT padded in HBM; the last K tile's padding region is
        # unspecified -> zero those columns before the dot (cheap VPU work on
        # an HBM-bound kernel).
        cols = k * tk + lax.broadcasted_iota(jnp.int32, a.shape, 1)
        a = jnp.where(cols < n_cols, a, jnp.zeros_like(a))

    if xw_resident:
        # xw lives fully in VMEM (fetched once); take this step's K slice.
        start = pl.multiple_of(k * tk, tk)
        xw = xw_ref[pl.ds(start, tk), :]
    else:
        xw = xw_ref[...]

    o_ref[...] += jnp.dot(a, xw, preferred_element_type=jnp.float32)

    @pl.when(k == pl.num_programs(1) - 1)
    def _():
        o_ref[...] = jnp.maximum(o_ref[...], 0.0)


def graph_conv_layer(x, adj, weight, bias, *, tm=512, tk=1024,
                     adj_in_bf16=False):
    """relu(adj @ x @ W^T + b).

    x: (N, F_in), adj: (N, N), weight: (F_out, F_in), bias: (F_out,).
    """
    n, f_in = x.shape
    f_out = weight.shape[0]
    f_pad = _round_up(f_out, 128)                     # lane-dense output width

    # Tiny graphs: pad adj once (negligible at this size) so blocks satisfy
    # the (8, 128) rule without block dims exceeding the array dims.
    if n < 128:
        n_arr = _round_up(n, 128)
        adj = jnp.pad(adj, ((0, n_arr - n), (0, n_arr - n)))
    else:
        n_arr = n

    # --- tile selection ------------------------------------------------------
    # Row tiles: multiple of 8; keep >= 2 row tiles so the "parallel" axis can
    # be split across v7x's two TensorCores.
    tm_eff = min(_round_up(tm, 8), _round_up(pl.cdiv(n_arr, 2), 8))
    # K tiles: multiple of 128 and never larger than the array (ragged tail is
    # masked in-kernel, never padded in HBM).
    tk_eff = min(_round_up(tk, 128), max(128, (n_arr // 128) * 128))
    if adj_in_bf16:
        tm_eff = min(_round_up(tm_eff, 16), _round_up(n_arr, 16))

    grid = (pl.cdiv(n_arr, tm_eff), pl.cdiv(n_arr, tk_eff))
    n_kp = grid[1] * tk_eff                           # xw rows, K-tile aligned

    # --- xw = x @ W^T in plain XLA (tiny vs adj); lane-dense + K-aligned -----
    wt_p = jnp.pad(weight.T.astype(jnp.float32), ((0, 0), (0, f_pad - f_out)))
    xw = jnp.dot(x.astype(jnp.float32), wt_p)         # (n, f_pad)
    xw = jnp.pad(xw, ((0, n_kp - n), (0, 0)))
    b_p = jnp.pad(bias.astype(jnp.float32), (0, f_pad - f_out)).reshape(1, f_pad)

    if adj_in_bf16:
        adj = adj.astype(jnp.bfloat16)
        xw = xw.astype(jnp.bfloat16)
    itemsize = 2 if adj_in_bf16 else 4

    # Keep xw resident in VMEM unless it would crowd out the adj tiles
    # (e.g. N >= ~32K on v7x's 64 MiB per-TC VMEM) -> then stream it per K step.
    xw_resident = n_kp * f_pad * itemsize <= (12 << 20)
    if xw_resident:
        xw_spec = pl.BlockSpec((n_kp, f_pad), lambda i, k: (0, 0))
    else:
        xw_spec = pl.BlockSpec((tk_eff, f_pad), lambda i, k: (k, 0))

    # Explicit VMEM budget (v5e scoped default is only 16 MiB).
    vmem_need = (2 * tm_eff * tk_eff * itemsize                  # adj (dbl-buf)
                 + (2 * n_kp if xw_resident else 2 * tk_eff) * f_pad * itemsize
                 + 2 * tm_eff * f_pad * 4                        # output block
                 + 2 * f_pad * 4)                                # bias
    vmem_limit = int(min(max(2 * vmem_need + (4 << 20), 32 << 20), 48 << 20))

    xw_reads = 1 if xw_resident else grid[0]
    cost = pl.CostEstimate(
        flops=2 * n_arr * n_arr * f_pad,
        transcendentals=0,
        bytes_accessed=(n_arr * n_arr * itemsize
                        + xw_reads * n_kp * f_pad * itemsize
                        + n_arr * f_pad * 4 + f_pad * 4))

    kernel = functools.partial(
        _gcn_agg_kernel, n_cols=adj.shape[1], tk=tk_eff,
        xw_resident=xw_resident, mask_k_tail=(n_arr % tk_eff) != 0)

    out_p = pl.pallas_call(
        kernel,
        out_shape=jax.ShapeDtypeStruct((n_arr, f_pad), jnp.float32),
        grid_spec=pltpu.PrefetchScalarGridSpec(
            num_scalar_prefetch=0,
            grid=grid,
            in_specs=[
                pl.BlockSpec((tm_eff, tk_eff), lambda i, k: (i, k)),  # adj
                xw_spec,                                              # xw
                pl.BlockSpec((1, f_pad), lambda i, k: (0, 0)),        # bias
            ],
            out_specs=pl.BlockSpec((tm_eff, f_pad), lambda i, k: (i, 0)),
        ),
        compiler_params=pltpu.CompilerParams(
            dimension_semantics=("parallel", "arbitrary"),
            vmem_limit_bytes=vmem_limit),
        cost_estimate=cost,
    )(adj, xw, b_p)

    return out_p[:n, :f_out].astype(x.dtype)


if __name__ == "__main__":
    master = jax.random.PRNGKey(0)
    key1, key2 = jax.random.split(master, 2)

    def make_inputs(key, n, f_in, f_out):
        k_x, k_adj, k_w, k_b = jax.random.split(key, 4)
        x = jax.random.normal(k_x, (n, f_in), dtype=jnp.float32)
        # Symmetric row-normalized adjacency with self-loops (deterministic).
        a = (jax.random.uniform(k_adj, (n, n)) > 0.8).astype(jnp.float32)
        a = jnp.maximum(a, a.T) + jnp.eye(n, dtype=jnp.float32)
        adj = a / jnp.sum(a, axis=1, keepdims=True)
        # nn.Linear-style init (uniform in +/- 1/sqrt(fan_in)).
        bound = 1.0 / (f_in ** 0.5)
        w = jax.random.uniform(k_w, (f_out, f_in), minval=-bound, maxval=bound,
                               dtype=jnp.float32)
        b = jax.random.uniform(k_b, (f_out,), minval=-bound, maxval=bound,
                               dtype=jnp.float32)
        return x, adj, w, b

    def ref_fn(x, adj, w, b):
        return jnp.maximum(jnp.matmul(adj, x) @ w.T + b, 0.0)

    # Case 1: aligned shapes.  Production defaults are tm=512 / tk=1024; small
    # tiles here so the demo really exercises a 4x4 grid with K accumulation.
    x, adj, w, b = make_inputs(key1, 512, 64, 32)
    f = jax.jit(functools.partial(graph_conv_layer, tm=128, tk=128))
    out = jax.block_until_ready(f(x, adj, w, b))
    ref = ref_fn(x, adj, w, b)
    assert out.shape == ref.shape
    assert jnp.allclose(out, ref, atol=5e-4, rtol=5e-4), (
        float(jnp.max(jnp.abs(out - ref))))

    # Case 2: ragged N (not a tile multiple) -> no adj padding, masked last K
    # tile + clipped partial-row writeback.
    x, adj, w, b = make_inputs(key2, 300, 48, 24)
    f = jax.jit(functools.partial(graph_conv_layer, tm=128, tk=128))
    out = jax.block_until_ready(f(x, adj, w, b))
    ref = ref_fn(x, adj, w, b)
    assert out.shape == ref.shape
    assert jnp.allclose(out, ref, atol=5e-4, rtol=5e-4), (
        float(jnp.max(jnp.abs(out - ref))))

    print("KERNEL_OK")
</pallas_src>

<mosaic_0001>
module attributes {stable_mosaic.version = 11 : i64} {
  func.func @_gcn_agg_kernel(%arg0: i32, %arg1: i32, %arg2: memref<128x128xf32, #tpu.memory_space<vmem>>, %arg3: memref<512x128xf32, #tpu.memory_space<vmem>>, %arg4: memref<1x128xf32, #tpu.memory_space<vmem>>, %arg5: memref<128x128xf32, #tpu.memory_space<vmem>>) attributes {dimension_semantics = [#tpu.dimension_semantics<parallel>, #tpu.dimension_semantics<arbitrary>], iteration_bounds = array<i64: 4, 4>, scalar_prefetch = 0 : i64, scratch_operands = 0 : i64, tpu.core_type = #tpu.core_type<tc>, window_params = [{transform_indices = @transform_0, window_bounds = array<i64: 128, 128>}, {pipeline_mode = #tpu.pipeline_mode<synchronous>, transform_indices = @transform_1, window_bounds = array<i64: 512, 128>}, {pipeline_mode = #tpu.pipeline_mode<synchronous>, transform_indices = @transform_2, window_bounds = array<i64: 1, 128>}, {transform_indices = @transform_3, window_bounds = array<i64: 128, 128>}]} {
    %c0_i32 = arith.constant 0 : i32
    %0 = arith.cmpi eq, %arg1, %c0_i32 : i32
    %1 = arith.extui %0 : i1 to i32
    %c0_i32_0 = arith.constant 0 : i32
    %2 = arith.cmpi ne, %1, %c0_i32_0 : i32
    scf.if %2 {
      %c0_8 = arith.constant 0 : index
      %c0_9 = arith.constant 0 : index
      %15 = vector.load %arg4[%c0_8, %c0_9] : memref<1x128xf32, #tpu.memory_space<vmem>>, vector<1x128xf32>
      %16 = vector.shape_cast %15 : vector<1x128xf32> to vector<1x128xf32>
      %17 = vector.broadcast %16 : vector<1x128xf32> to vector<128x128xf32>
      %c0_10 = arith.constant 0 : index
      %c0_11 = arith.constant 0 : index
      %18 = vector.load %arg5[%c0_10, %c0_11] : memref<128x128xf32, #tpu.memory_space<vmem>>, vector<128x128xf32>
      tpu.vector_store %arg5[%c0_10, %c0_11], %17 {strides = array<i32>} : memref<128x128xf32, #tpu.memory_space<vmem>>, vector<128x128xf32>,
    } else {
    }
    %c0 = arith.constant 0 : index
    %c0_1 = arith.constant 0 : index
    %3 = vector.load %arg2[%c0, %c0_1] : memref<128x128xf32, #tpu.memory_space<vmem>>, vector<128x128xf32>
    %c128_i32 = arith.constant 128 : i32
    %4 = arith.muli %arg1, %c128_i32 : i32
    %5 = tpu.assume_multiple %4, 128 : i32
    %6 = arith.index_cast %5 : i32 to index
    %c0_2 = arith.constant 0 : index
    %7 = vector.load %arg3[%6, %c0_2] : memref<512x128xf32, #tpu.memory_space<vmem>>, vector<128x128xf32>
    %c0_3 = arith.constant 0 : index
    %c0_4 = arith.constant 0 : index
    %8 = vector.load %arg5[%c0_3, %c0_4] : memref<128x128xf32, #tpu.memory_space<vmem>>, vector<128x128xf32>
    %cst = arith.constant dense<0.000000e+00> : vector<128x128xf32>
    %9 = tpu.matmul %3, %7, %cst {dimension_numbers = #tpu.dot_dimension_numbers<[1], [0], [0], [1], [0, 0, 1, 1], [], []>} : vector<128x128xf32>, vector<128x128xf32>, vector<128x128xf32> -> vector<128x128xf32>
    %10 = arith.addf %8, %9 : vector<128x128xf32>
    %c0_5 = arith.constant 0 : index
    %c0_6 = arith.constant 0 : index
    %11 = vector.load %arg5[%c0_5, %c0_6] : memref<128x128xf32, #tpu.memory_space<vmem>>, vector<128x128xf32>
    tpu.vector_store %arg5[%c0_5, %c0_6], %10 {strides = array<i32>} : memref<128x128xf32, #tpu.memory_space<vmem>>, vector<128x128xf32>,
    %c3_i32 = arith.constant 3 : i32
    %12 = arith.cmpi eq, %arg1, %c3_i32 : i32
    %13 = arith.extui %12 : i1 to i32
    %c0_i32_7 = arith.constant 0 : i32
    %14 = arith.cmpi ne, %13, %c0_i32_7 : i32
    scf.if %14 {
      %c0_8 = arith.constant 0 : index
      %c0_9 = arith.constant 0 : index
      %15 = vector.load %arg5[%c0_8, %c0_9] : memref<128x128xf32, #tpu.memory_space<vmem>>, vector<128x128xf32>
      %cst_10 = arith.constant 0.000000e+00 : f32
      %16 = vector.broadcast %cst_10 : f32 to vector<128x128xf32>
      %17 = arith.maximumf %15, %16 : vector<128x128xf32>
      %c0_11 = arith.constant 0 : index
      %c0_12 = arith.constant 0 : index
      %18 = vector.load %arg5[%c0_11, %c0_12] : memref<128x128xf32, #tpu.memory_space<vmem>>, vector<128x128xf32>
      tpu.vector_store %arg5[%c0_11, %c0_12], %17 {strides = array<i32>} : memref<128x128xf32, #tpu.memory_space<vmem>>, vector<128x128xf32>,
    } else {
    }
    return
  }
  func.func @transform_0(%arg0: i32, %arg1: i32) -> (i32, i32) {
    %c0_i32 = arith.constant 0 : i32
    return %arg0, %arg1 : i32, i32
  }
  func.func @transform_1(%arg0: i32, %arg1: i32) -> (i32, i32) {
    %c0_i32 = arith.constant 0 : i32
    %c0_i32_0 = arith.constant 0 : i32
    %c0_i32_1 = arith.constant 0 : i32
    return %c0_i32, %c0_i32_0 : i32, i32
  }
  func.func @transform_2(%arg0: i32, %arg1: i32) -> (i32, i32) {
    %c0_i32 = arith.constant 0 : i32
    %c0_i32_0 = arith.constant 0 : i32
    %c0_i32_1 = arith.constant 0 : i32
    return %c0_i32, %c0_i32_0 : i32, i32
  }
  func.func @transform_3(%arg0: i32, %arg1: i32) -> (i32, i32) {
    %c0_i32 = arith.constant 0 : i32
    %c0_i32_0 = arith.constant 0 : i32
    return %arg0, %c0_i32 : i32, i32
  }
}

</mosaic_0001>

<llo_original>
// kernel: graph_conv_layer.1
$region0: #{graph_conv_layer.1}
  #allocation0 [shape = 'u32[]', space=smem, size = 0x4, offset = 0x4, fixed_abs, tag = 'smem constant byte address 0x4 - core index']
  #allocation1 [shape = 'u32[144,128]{1,0:T(1,128)}', space=vmem, size = 0x12000, scoped, tag = 'internal scratch']
  %s0 = inlined_call_operand.hbm [shape: f32[512,512], index: 0, kind: input, shape index: {}]
  %s1 = inlined_call_operand.vmem [shape: f32[512,128], index: 1, kind: input, shape index: {}]
  %s2 = inlined_call_operand.vmem [shape: f32[1,128], index: 2, kind: input, shape index: {}]
  %s3 = inlined_call_operand.vmem [shape: f32[512,128], index: 3, kind: output, shape index: {}]
  %s4 = sld [smem:[#allocation0]]
  $region57: #{graph_conv_layer.1} parent=0
    _
  %s6 = ssub.s32 1, %s4
  %s7 = scalar_select 0, %s6, %s4
  $region1: #{graph_conv_layer.1} parent=0
    #allocation2 [shape = 'u8[131072]{0}', space=vmem, size = 0x20000, scoped, tag = 'input window, operand 0']
    #allocation3 [shape = 's32[2]{0}', space=sflag, size = 0x8, scoped, tag = 'scoped memory for graph_conv_layer.1']
    %8 = vsyncpa [#allocation3], 0
    %s9 = scalar_lea.sflag [#allocation3], 1
    %10 = vsyncpa %s9, 0
    loop: start=0, step=1, limit=18
    $region2: #{graph_conv_layer.1} parent=1 // loop_pre_header
      _
    $region3: #{graph_conv_layer.1} parent=1 // loop_header
      %s12 = sphi 0, %s16
      %p13 = scmp.ge.s32.totalorder %s12, 18
      %s19 = sphi 0, %s31
      %s20 = sphi 0, %s27
      %s21 = sphi 0, %s19
      %s22 = sphi 0, %s20
      %s23 = sphi 0, %s21
      %s24 = sphi 0, %s22
      %s36 = sphi 0, %s38
      %s39 = sphi 0, %s36
      %s40 = sphi 0, %s39
      %s56 = sphi 0, %s40
      %s60 = sphi 0, %s60
      %s62 = sphi 0, %s60
      %s63 = sphi 0, %s62
      %s77 = sphi 0, %s63
      %s81 = sphi 0, %s81
      %s83 = sphi 0, %s81
      %s84 = sphi 0, %s83
      %s98 = sphi 0, %s84
      %s104 = sphi 0, %s106
      %s107 = sphi 0, %s104
      %s108 = sphi 0, %s107
      %s124 = sphi 0, %s108
    $region4: #{graph_conv_layer.1} parent=1 // loop_header_branch
      %15 = sbr.rel (%p13) target = $region8
    $region5: #{graph_conv_layer.1} parent=1 // loop_body
      %s17 = ssub.s32 %s12, 1
      %s18 = ssub.s32 %s12, 2
      %s25 = sadd.s32 1, %s20
      %p26 = scmp.ge.s32.totalorder %s25, 4
      %s27 = scalar_select %p26, 0, %s25
      %s28 = sadd.s32 1, %s19
      %s29 = scalar_select %p26, %s28, %s19
      %p30 = scmp.ge.s32.totalorder %s29, 4
      %s31 = scalar_select %p30, 0, %s29
      %s32 = ssub.s32 %s19, %s31
      %s33 = ssub.s32 %s20, %s27
      %s34 = sor.u32 %s32, %s33
      %p35 = scmp.eq.s32.totalorder %s34, 0
      %s37 = sadd.s32 %s36, 1
      %s38 = scalar_select %p35, %s36, %s37
      %p41 = pneg %p35
      %p42 = scmp.eq.s32.totalorder %s12, 15
      %p43 = por %p41, %p42
      %p44 = scmp.ne.s32.totalorder %s36, %s39
      %p45 = scmp.eq.s32.totalorder %s12, 0
      %p46 = por %p44, %p45
      %p47 = scmp.ne.s32.totalorder %s36, %s39
      %p48 = scmp.eq.s32.totalorder %s17, 15
      %p49 = por %p47, %p48
      %p50 = scmp.ne.s32.totalorder %s39, %s40
      %p51 = scmp.eq.s32.totalorder %s17, 0
      %p52 = por %p50, %p51
      %p53 = scmp.ne.s32.totalorder %s39, %s40
      %p54 = scmp.eq.s32.totalorder %s18, 15
      %p55 = por %p53, %p54
      %p57 = scmp.ne.s32.totalorder %s40, %s56
      %p58 = scmp.eq.s32.totalorder %s18, 0
      %p59 = por %p57, %p58
      %s61 = sadd.s32 %s60, 1
      %p64 = scmp.eq.s32.totalorder %s12, 15
      %p65 = scmp.ne.s32.totalorder %s60, %s62
      %p66 = scmp.eq.s32.totalorder %s12, 0
      %p67 = por %p65, %p66
      %p68 = scmp.ne.s32.totalorder %s60, %s62
      %p69 = scmp.eq.s32.totalorder %s17, 15
      %p70 = por %p68, %p69
      %p71 = scmp.ne.s32.totalorder %s62, %s63
      %p72 = scmp.eq.s32.totalorder %s17, 0
      %p73 = por %p71, %p72
      %p74 = scmp.ne.s32.totalorder %s62, %s63
      %p75 = scmp.eq.s32.totalorder %s18, 15
      %p76 = por %p74, %p75
      %p78 = scmp.ne.s32.totalorder %s63, %s77
      %p79 = scmp.eq.s32.totalorder %s18, 0
      %p80 = por %p78, %p79
      %s82 = sadd.s32 %s81, 1
      %p85 = scmp.eq.s32.totalorder %s12, 15
      %p86 = scmp.ne.s32.totalorder %s81, %s83
      %p87 = scmp.eq.s32.totalorder %s12, 0
      %p88 = por %p86, %p87
      %p89 = scmp.ne.s32.totalorder %s81, %s83
      %p90 = scmp.eq.s32.totalorder %s17, 15
      %p91 = por %p89, %p90
      %p92 = scmp.ne.s32.totalorder %s83, %s84
      %p93 = scmp.eq.s32.totalorder %s17, 0
      %p94 = por %p92, %p93
      %p95 = scmp.ne.s32.totalorder %s83, %s84
      %p96 = scmp.eq.s32.totalorder %s18, 15
      %p97 = por %p95, %p96
      %p99 = scmp.ne.s32.totalorder %s84, %s98
      %p100 = scmp.eq.s32.totalorder %s18, 0
      %p101 = por %p99, %p100
      %s102 = ssub.s32 %s19, %s31
      %p103 = scmp.eq.s32.totalorder %s102, 0
      %s105 = sadd.s32 %s104, 1
      %s106 = scalar_select %p103, %s104, %s105
      %p109 = pneg %p103
      %p110 = scmp.eq.s32.totalorder %s12, 15
      %p111 = por %p109, %p110
      %p112 = scmp.ne.s32.totalorder %s104, %s107
      %p113 = scmp.eq.s32.totalorder %s12, 0
      %p114 = por %p112, %p113
      %p115 = scmp.ne.s32.totalorder %s104, %s107
      %p116 = scmp.eq.s32.totalorder %s17, 15
      %p117 = por %p115, %p116
      %p118 = scmp.ne.s32.totalorder %s107, %s108
      %p119 = scmp.eq.s32.totalorder %s17, 0
      %p120 = por %p118, %p119
      %p121 = scmp.ne.s32.totalorder %s107, %s108
      %p122 = scmp.eq.s32.totalorder %s18, 15
      %p123 = por %p121, %p122
      %p125 = scmp.ne.s32.totalorder %s108, %s124
      %p126 = scmp.eq.s32.totalorder %s18, 0
      %p127 = por %p125, %p126
      %p128 = scmp.le.s32.totalorder 1, %s12
      %p129 = scmp.lt.s32.totalorder %s12, 17
      %p130 = pnand %p128, %p129
      %p131 = pneg %p130
      // Predicated region
      $region9: #{graph_conv_layer.1} parent=5 // pred_check
        _
      $region10: #{graph_conv_layer.1} parent=5 // pred_check_branch
        %133 = sbr.rel (%p130) target = $region12
      $region11: #{graph_conv_layer.1} parent=5 // pred_region
        %s134 = ssub.s32 %s12, 1
        // Predicated region
        $region13: #{graph_conv_layer.1} parent=11 // pred_check
          %p135 = pneg %p73
        $region14: #{graph_conv_layer.1} parent=11 // pred_check_branch
          %137 = sbr.rel (%p135) target = $region16
        $region15: #{graph_conv_layer.1} parent=11 // pred_region
          _
        $region16: #{graph_conv_layer.1} parent=11 // pred_fallthru
          _
        // Predicated region
        $region17: #{graph_conv_layer.1} parent=11 // pred_check
          %p138 = pneg %p94
        $region18: #{graph_conv_layer.1} parent=11 // pred_check_branch
          %140 = sbr.rel (%p138) target = $region20
        $region19: #{graph_conv_layer.1} parent=11 // pred_region
          _
        $region20: #{graph_conv_layer.1} parent=11 // pred_fallthru
          _
      $region12: #{graph_conv_layer.1} parent=5 // pred_fallthru
        _
      %p141 = scmp.lt.s32.totalorder %s12, 16
      // Predicated region
      $region21: #{graph_conv_layer.1} parent=5 // pred_check
        %p142 = pneg %p141
      $region22: #{graph_conv_layer.1} parent=5 // pred_check_branch
        %144 = sbr.rel (%p142) target = $region24
      $region23: #{graph_conv_layer.1} parent=5 // pred_region
        // Predicated region
        $region25: #{graph_conv_layer.1} parent=23 // pred_check
          %p145 = pneg %p46
        $region26: #{graph_conv_layer.1} parent=23 // pred_check_branch
          %147 = sbr.rel (%p145) target = $region28
        $region27: #{graph_conv_layer.1} parent=23 // pred_region
          %s148 = sand.u32 %s36, 1
          %s149 = scalar_lea.sflag [#allocation3], %s148
          %s150 = sand.u32 %s36, 1
          %s151 = smul.addr %s150, 128
          %s152 = scalar_lea.vmem [#allocation2], %s151
          %s153 = smul.u32 16, %s19
          %s155 = ssub.s32 2048, 2048
          %156 = vsyncadd %s149, %s155
          %s157 = smul.addr %s153, 4
          %s158 = sadd.s32 %s20, %s157
          %s159 = smul.addr %s158, 128
          %s160 = scalar_lea.hbm %s0, %s159
          %s161 = sshll.u32 %s152, 4
          %s162 = int_to_ptr.vmem [resolvable:$true] %s161
          %167 = dma.hbm_to_vmem [thread:$0]  %s160, 2048, %s162, %s149, 512, 128, 8
        $region28: #{graph_conv_layer.1} parent=23 // pred_fallthru
          _
      $region24: #{graph_conv_layer.1} parent=5 // pred_fallthru
        _
      %p168 = scmp.le.s32.totalorder 1, %s12
      %p169 = scmp.lt.s32.totalorder %s12, 17
      %p170 = pnand %p168, %p169
      %p171 = pneg %p170
      // Predicated region
      $region29: #{graph_conv_layer.1} parent=5 // pred_check
        _
      $region30: #{graph_conv_layer.1} parent=5 // pred_check_branch
        %173 = sbr.rel (%p170) target = $region32
      $region31: #{graph_conv_layer.1} parent=5 // pred_region
        %s174 = ssub.s32 %s12, 1
        %s175 = sand.u32 %s39, 1
        %s176 = scalar_lea.sflag [#allocation3], %s175
        %s177 = sand.u32 %s39, 1
        %s178 = smul.addr %s177, 128
        %s179 = scalar_lea.vmem [#allocation2], %s178
        // Predicated region
        $region33: #{graph_conv_layer.1} parent=31 // pred_check
          %p180 = pneg %p52
        $region34: #{graph_conv_layer.1} parent=31 // pred_check_branch
          %182 = sbr.rel (%p180) target = $region36
        $region35: #{graph_conv_layer.1} parent=31 // pred_region
          %183 = dma.done %s176, 2048
        $region36: #{graph_conv_layer.1} parent=31 // pred_fallthru
          _
        %s184 = sand.u32 %s39, 1
        %s185 = scalar_lea.sflag [#allocation3], %s184
        %s186 = sand.u32 %s39, 1
        %s187 = smul.addr %s186, 128
        %s188 = scalar_lea.vmem [#allocation2], %s187
        %p189 = pneg %p52
        %p190 = pneg %p49
        %p191 = pneg %p73
        %p192 = pneg %p70
        %p193 = pneg %p94
        %p194 = pneg %p91
        %p195 = pneg %p120
        %p196 = pneg %p117
        %s197 = smul.u32 16, %s21
        %p198 = scmp.lt.s32.totalorder %s197, 63
        %s199 = scalar_select %p198, %s197, 63
        %s200 = smul.addr %s199, 8
        %s201 = scalar_lea.vmem %s3, %s200
        %s202 = smul.u32 16, %s21
        %s203 = smul.u32 16, %s21
        %p204 = scmp.lt.s32.totalorder %s203, 63
        %s205 = scalar_select %p204, %s203, 63
        %s206 = smul.addr %s205, 8
        %s207 = scalar_lea.vmem %s3, %s206
        %s208 = smul.u32 16, %s21
        %p209 = scmp.eq.s32.totalorder %s22, 0
        // Predicated region
        $region37: #{graph_conv_layer.1} parent=31 // pred_check
          %p210 = pneg %p209
        $region38: #{graph_conv_layer.1} parent=31 // pred_check_branch
          %212 = sbr.rel (%p210) target = $region40
        $region39: #{graph_conv_layer.1} parent=31 // pred_region
          %v213 = vld [vmem:[%s2] sm:$0x1]
          %v215 = vlaneseq
          %v216 = vshrl.u32 %v215, 7
          %v217 = vsub.s32 0, %v216
          %v218 = vrot.slane %v213, %v217
          %220 = vst [vmem:[%s207] sm:$0xff] %v218
          %221 = vst [vmem:[%s207 + $0x8] sm:$0xff] %v218
          %222 = vst [vmem:[%s207 + $0x10] sm:$0xff] %v218
          %223 = vst [vmem:[%s207 + $0x18] sm:$0xff] %v218
          %224 = vst [vmem:[%s207 + $0x20] sm:$0xff] %v218
          %225 = vst [vmem:[%s207 + $0x28] sm:$0xff] %v218
          %226 = vst [vmem:[%s207 + $0x30] sm:$0xff] %v218
          %227 = vst [vmem:[%s207 + $0x38] sm:$0xff] %v218
          %228 = vst [vmem:[%s207 + $0x40] sm:$0xff] %v218
          %229 = vst [vmem:[%s207 + $0x48] sm:$0xff] %v218
          %230 = vst [vmem:[%s207 + $0x50] sm:$0xff] %v218
          %231 = vst [vmem:[%s207 + $0x58] sm:$0xff] %v218
          %232 = vst [vmem:[%s207 + $0x60] sm:$0xff] %v218
          %233 = vst [vmem:[%s207 + $0x68] sm:$0xff] %v218
          %234 = vst [vmem:[%s207 + $0x70] sm:$0xff] %v218
          %235 = vst [vmem:[%s207 + $0x78] sm:$0xff] %v218
        $region40: #{graph_conv_layer.1} parent=31 // pred_fallthru
          _
        %v236 = vld [vmem:[%s179] sm:$0xff]
        %v237 = vld [vmem:[%s179 + $0x8] sm:$0xff]
        %v238 = vld [vmem:[%s179 + $0x10] sm:$0xff]
        %v239 = vld [vmem:[%s179 + $0x18] sm:$0xff]
        %v240 = vld [vmem:[%s179 + $0x20] sm:$0xff]
        %v241 = vld [vmem:[%s179 + $0x28] sm:$0xff]
        %v242 = vld [vmem:[%s179 + $0x30] sm:$0xff]
        %v243 = vld [vmem:[%s179 + $0x38] sm:$0xff]
        %v244 = vld [vmem:[%s179 + $0x40] sm:$0xff]
        %v245 = vld [vmem:[%s179 + $0x48] sm:$0xff]
        %v246 = vld [vmem:[%s179 + $0x50] sm:$0xff]
        %v247 = vld [vmem:[%s179 + $0x58] sm:$0xff]
        %v248 = vld [vmem:[%s179 + $0x60] sm:$0xff]
        %v249 = vld [vmem:[%s179 + $0x68] sm:$0xff]
        %v250 = vld [vmem:[%s179 + $0x70] sm:$0xff]
        %v251 = vld [vmem:[%s179 + $0x78] sm:$0xff]
        %s252 = smul.u32 %s22, 128
        %s253 = scalar_lea.vmem %s1, %s252
        %v254 = vld [vmem:[%s253] sm:$0xff]
        %v255 = vld [vmem:[%s253 + $0x8] sm:$0xff]
        %v256 = vld [vmem:[%s253 + $0x10] sm:$0xff]
        %v257 = vld [vmem:[%s253 + $0x18] sm:$0xff]
        %v258 = vld [vmem:[%s253 + $0x20] sm:$0xff]
        %v259 = vld [vmem:[%s253 + $0x28] sm:$0xff]
        %v260 = vld [vmem:[%s253 + $0x30] sm:$0xff]
        %v261 = vld [vmem:[%s253 + $0x38] sm:$0xff]
        %v262 = vld [vmem:[%s253 + $0x40] sm:$0xff]
        %v263 = vld [vmem:[%s253 + $0x48] sm:$0xff]
        %v264 = vld [vmem:[%s253 + $0x50] sm:$0xff]
        %v265 = vld [vmem:[%s253 + $0x58] sm:$0xff]
        %v266 = vld [vmem:[%s253 + $0x60] sm:$0xff]
        %v267 = vld [vmem:[%s253 + $0x68] sm:$0xff]
        %v268 = vld [vmem:[%s253 + $0x70] sm:$0xff]
        %v269 = vld [vmem:[%s253 + $0x78] sm:$0xff]
        %v270 = vld [vmem:[%s207] sm:$0xff]
        %v271 = vld [vmem:[%s207 + $0x8] sm:$0xff]
        %v272 = vld [vmem:[%s207 + $0x10] sm:$0xff]
        %v273 = vld [vmem:[%s207 + $0x18] sm:$0xff]
        %v274 = vld [vmem:[%s207 + $0x20] sm:$0xff]
        %v275 = vld [vmem:[%s207 + $0x28] sm:$0xff]
        %v276 = vld [vmem:[%s207 + $0x30] sm:$0xff]
        %v277 = vld [vmem:[%s207 + $0x38] sm:$0xff]
        %v278 = vld [vmem:[%s207 + $0x40] sm:$0xff]
        %v279 = vld [vmem:[%s207 + $0x48] sm:$0xff]
        %v280 = vld [vmem:[%s207 + $0x50] sm:$0xff]
        %v281 = vld [vmem:[%s207 + $0x58] sm:$0xff]
        %v282 = vld [vmem:[%s207 + $0x60] sm:$0xff]
        %v283 = vld [vmem:[%s207 + $0x68] sm:$0xff]
        %v284 = vld [vmem:[%s207 + $0x70] sm:$0xff]
        %v285 = vld [vmem:[%s207 + $0x78] sm:$0xff]
        %286 = vmatprep.subr.mxu0 0.0
        %287 = vmatpush1.msra.mxu0 %v254
        %288 = vmatprep.subr.mxu0 0.0
        %289 = vmatpush1.msra.mxu0 %v255
        %290 = vmatprep.subr.mxu0 0.0
        %291 = vmatpush1.msra.mxu0 %v256
        %292 = vmatprep.subr.mxu0 0.0
        %293 = vmatpush1.msra.mxu0 %v257
        %294 = vmatprep.subr.mxu0 0.0
        %295 = vmatpush1.msra.mxu0 %v258
        %296 = vmatprep.subr.mxu0 0.0
        %297 = vmatpush1.msra.mxu0 %v259
        %298 = vmatprep.subr.mxu0 0.0
        %299 = vmatpush1.msra.mxu0 %v260
        %300 = vmatprep.subr.mxu0 0.0
        %301 = vmatpush1.msra.mxu0 %v261
        %302 = vmatprep.subr.mxu0 0.0
        %303 = vmatpush1.msra.mxu0 %v262
        %304 = vmatprep.subr.mxu0 0.0
        %305 = vmatpush1.msra.mxu0 %v263
        %306 = vmatprep.subr.mxu0 0.0
        %307 = vmatpush1.msra.mxu0 %v264
        %308 = vmatprep.subr.mxu0 0.0
        %309 = vmatpush1.msra.mxu0 %v265
        %310 = vmatprep.subr.mxu0 0.0
        %311 = vmatpush1.msra.mxu0 %v266
        %312 = vmatprep.subr.mxu0 0.0
        %313 = vmatpush1.msra.mxu0 %v267
        %314 = vmatprep.subr.mxu0 0.0
        %315 = vmatpush1.msra.mxu0 %v268
        %316 = vmatprep.subr.mxu0 0.0
        %317 = vmatpush1.msra.mxu0 %v269
        %318 = vmatprep.subr.mxu0 0.0
        %319 = vmatpush1.msra.mxu0 0.0
        %320 = vmatprep.subr.mxu0 0.0
        %321 = vmatpush1.msra.mxu0 0.0
        %322 = vmatprep.subr.mxu0 0.0
        %323 = vmatpush1.msra.mxu0 0.0
        %324 = vmatprep.subr.mxu0 0.0
        %325 = vmatpush1.msra.mxu0 0.0
        %326 = vmatprep.subr.mxu0 0.0
        %327 = vmatpush1.msra.mxu0 0.0
        %328 = vmatprep.subr.mxu0 0.0
        %329 = vmatpush1.msra.mxu0 0.0
        %330 = vmatprep.subr.mxu0 0.0
        %331 = vmatpush1.msra.mxu0 0.0
        %332 = vmatprep.subr.mxu0 0.0
        %333 = vmatpush1.msra.mxu0 0.0
        %334 = vmatprep.subr.mxu0 0.0
        %335 = vmatpush1.msra.mxu0 0.0
        %336 = vmatprep.subr.mxu0 0.0
        %337 = vmatpush1.msra.mxu0 0.0
        %338 = vmatprep.subr.mxu0 0.0
        %339 = vmatpush1.msra.mxu0 0.0
        %340 = vmatprep.subr.mxu0 0.0
        %341 = vmatpush1.msra.mxu0 0.0
        %342 = vmatprep.subr.mxu0 0.0
        %343 = vmatpush1.msra.mxu0 0.0
        %344 = vmatprep.subr.mxu0 0.0
        %345 = vmatpush1.msra.mxu0 0.0
        %346 = vmatprep.subr.mxu0 0.0
        %347 = vmatpush1.msra.mxu0 0.0
        %348 = vmatprep.subr.mxu0 0.0
        %349 = vmatpush1.msra.mxu0 0.0
        %350 = vmatprep.mubr.f32.mxu0 0.0
        %351 = vmatmul.mubr.f32.gmra.mrb[0].mxu0 %v236
        %v352 = vpop.f32.mrb[0].mxu0
        %v353 = vadd.f32 0.0, %v352
        %v354 = vpop.f32.mrb[0].mxu0
        %355 = vmatprep.mubr.f32.mxu0 0.0
        %356 = vmatmul.mubr.f32.gmra.mrb[0].mxu0 %v237
        %v357 = vpop.f32.mrb[0].mxu0
        %v358 = vadd.f32 0.0, %v357
        %v359 = vpop.f32.mrb[0].mxu0
        %360 = vmatprep.mubr.f32.mxu0 0.0
        %361 = vmatmul.mubr.f32.gmra.mrb[0].mxu0 %v238
        %v362 = vpop.f32.mrb[0].mxu0
        %v363 = vadd.f32 0.0, %v362
        %v364 = vpop.f32.mrb[0].mxu0
        %365 = vmatprep.mubr.f32.mxu0 0.0
        %366 = vmatmul.mubr.f32.gmra.mrb[0].mxu0 %v239
        %v367 = vpop.f32.mrb[0].mxu0
        %v368 = vadd.f32 0.0, %v367
        %v369 = vpop.f32.mrb[0].mxu0
        %370 = vmatprep.mubr.f32.mxu0 0.0
        %371 = vmatmul.mubr.f32.gmra.mrb[0].mxu0 %v240
        %v372 = vpop.f32.mrb[0].mxu0
        %v373 = vadd.f32 0.0, %v372
        %v374 = vpop.f32.mrb[0].mxu0
        %375 = vmatprep.mubr.f32.mxu0 0.0
        %376 = vmatmul.mubr.f32.gmra.mrb[0].mxu0 %v241
        %v377 = vpop.f32.mrb[0].mxu0
        %v378 = vadd.f32 0.0, %v377
        %v379 = vpop.f32.mrb[0].mxu0
        %380 = vmatprep.mubr.f32.mxu0 0.0
        %381 = vmatmul.mubr.f32.gmra.mrb[0].mxu0 %v242
        %v382 = vpop.f32.mrb[0].mxu0
        %v383 = vadd.f32 0.0, %v382
        %v384 = vpop.f32.mrb[0].mxu0
        %385 = vmatprep.mubr.f32.mxu0 0.0
        %386 = vmatmul.mubr.f32.gmra.mrb[0].mxu0 %v243
        %v387 = vpop.f32.mrb[0].mxu0
        %v388 = vadd.f32 0.0, %v387
        %v389 = vpop.f32.mrb[0].mxu0
        %390 = vmatprep.mubr.f32.mxu0 0.0
        %391 = vmatmul.mubr.f32.gmra.mrb[0].mxu0 %v244
        %v392 = vpop.f32.mrb[0].mxu0
        %v393 = vadd.f32 0.0, %v392
        %v394 = vpop.f32.mrb[0].mxu0
        %395 = vmatprep.mubr.f32.mxu0 0.0
        %396 = vmatmul.mubr.f32.gmra.mrb[0].mxu0 %v245
        %v397 = vpop.f32.mrb[0].mxu0
        %v398 = vadd.f32 0.0, %v397
        %v399 = vpop.f32.mrb[0].mxu0
        %400 = vmatprep.mubr.f32.mxu0 0.0
        %401 = vmatmul.mubr.f32.gmra.mrb[0].mxu0 %v246
        %v402 = vpop.f32.mrb[0].mxu0
        %v403 = vadd.f32 0.0, %v402
        %v404 = vpop.f32.mrb[0].mxu0
        %405 = vmatprep.mubr.f32.mxu0 0.0
        %406 = vmatmul.mubr.f32.gmra.mrb[0].mxu0 %v247
        %v407 = vpop.f32.mrb[0].mxu0
        %v408 = vadd.f32 0.0, %v407
        %v409 = vpop.f32.mrb[0].mxu0
        %410 = vmatprep.mubr.f32.mxu0 0.0
        %411 = vmatmul.mubr.f32.gmra.mrb[0].mxu0 %v248
        %v412 = vpop.f32.mrb[0].mxu0
        %v413 = vadd.f32 0.0, %v412
        %v414 = vpop.f32.mrb[0].mxu0
        %415 = vmatprep.mubr.f32.mxu0 0.0
        %416 = vmatmul.mubr.f32.gmra.mrb[0].mxu0 %v249
        %v417 = vpop.f32.mrb[0].mxu0
        %v418 = vadd.f32 0.0, %v417
        %v419 = vpop.f32.mrb[0].mxu0
        %420 = vmatprep.mubr.f32.mxu0 0.0
        %421 = vmatmul.mubr.f32.gmra.mrb[0].mxu0 %v250
        %v422 = vpop.f32.mrb[0].mxu0
        %v423 = vadd.f32 0.0, %v422
        %v424 = vpop.f32.mrb[0].mxu0
        %425 = vmatprep.mubr.f32.mxu0 0.0
        %426 = vmatmul.mubr.f32.gmra.mrb[0].mxu0 %v251
        %v427 = vpop.f32.mrb[0].mxu0
        %v428 = vadd.f32 0.0, %v427
        %v429 = vpop.f32.mrb[0].mxu0
        %430 = vdwg.mxu0
        %v431 = vadd.f32 %v270, %v353
        %v432 = vadd.f32 %v271, %v358
        %v433 = vadd.f32 %v272, %v363
        %v434 = vadd.f32 %v273, %v368
        %v435 = vadd.f32 %v274, %v373
        %v436 = vadd.f32 %v275, %v378
        %v437 = vadd.f32 %v276, %v383
        %v438 = vadd.f32 %v277, %v388
        %v439 = vadd.f32 %v278, %v393
        %v440 = vadd.f32 %v279, %v398
        %v441 = vadd.f32 %v280, %v403
        %v442 = vadd.f32 %v281, %v408
        %v443 = vadd.f32 %v282, %v413
        %v444 = vadd.f32 %v283, %v418
        %v445 = vadd.f32 %v284, %v423
        %v446 = vadd.f32 %v285, %v428
        %447 = vst [vmem:[%s207] sm:$0xff] %v431
        %448 = vst [vmem:[%s207 + $0x8] sm:$0xff] %v432
        %449 = vst [vmem:[%s207 + $0x10] sm:$0xff] %v433
        %450 = vst [vmem:[%s207 + $0x18] sm:$0xff] %v434
        %451 = vst [vmem:[%s207 + $0x20] sm:$0xff] %v435
        %452 = vst [vmem:[%s207 + $0x28] sm:$0xff] %v436
        %453 = vst [vmem:[%s207 + $0x30] sm:$0xff] %v437
        %454 = vst [vmem:[%s207 + $0x38] sm:$0xff] %v438
        %455 = vst [vmem:[%s207 + $0x40] sm:$0xff] %v439
        %456 = vst [vmem:[%s207 + $0x48] sm:$0xff] %v440
        %457 = vst [vmem:[%s207 + $0x50] sm:$0xff] %v441
        %458 = vst [vmem:[%s207 + $0x58] sm:$0xff] %v442
        %459 = vst [vmem:[%s207 + $0x60] sm:$0xff] %v443
        %460 = vst [vmem:[%s207 + $0x68] sm:$0xff] %v444
        %461 = vst [vmem:[%s207 + $0x70] sm:$0xff] %v445
        %462 = vst [vmem:[%s207 + $0x78] sm:$0xff] %v446
        %p463 = scmp.eq.s32.totalorder %s22, 3
        // Predicated region
        $region41: #{graph_conv_layer.1} parent=31 // pred_check
          %p464 = pneg %p463
        $region42: #{graph_conv_layer.1} parent=31 // pred_check_branch
          %466 = sbr.rel (%p464) target = $region44
        $region43: #{graph_conv_layer.1} parent=31 // pred_region
          %v467 = vld [vmem:[%s207] sm:$0xff]
          %v468 = vld [vmem:[%s207 + $0x8] sm:$0xff]
          %v469 = vld [vmem:[%s207 + $0x10] sm:$0xff]
          %v470 = vld [vmem:[%s207 + $0x18] sm:$0xff]
          %v471 = vld [vmem:[%s207 + $0x20] sm:$0xff]
          %v472 = vld [vmem:[%s207 + $0x28] sm:$0xff]
          %v473 = vld [vmem:[%s207 + $0x30] sm:$0xff]
          %v474 = vld [vmem:[%s207 + $0x38] sm:$0xff]
          %v475 = vld [vmem:[%s207 + $0x40] sm:$0xff]
          %v476 = vld [vmem:[%s207 + $0x48] sm:$0xff]
          %v477 = vld [vmem:[%s207 + $0x50] sm:$0xff]
          %v478 = vld [vmem:[%s207 + $0x58] sm:$0xff]
          %v479 = vld [vmem:[%s207 + $0x60] sm:$0xff]
          %v480 = vld [vmem:[%s207 + $0x68] sm:$0xff]
          %v481 = vld [vmem:[%s207 + $0x70] sm:$0xff]
          %v482 = vld [vmem:[%s207 + $0x78] sm:$0xff]
          %v483 = vmax.f32 %v467, 0.0
          %v484 = vmax.f32 %v468, 0.0
          %v485 = vmax.f32 %v469, 0.0
          %v486 = vmax.f32 %v470, 0.0
          %v487 = vmax.f32 %v471, 0.0
          %v488 = vmax.f32 %v472, 0.0
          %v489 = vmax.f32 %v473, 0.0
          %v490 = vmax.f32 %v474, 0.0
          %v491 = vmax.f32 %v475, 0.0
          %v492 = vmax.f32 %v476, 0.0
          %v493 = vmax.f32 %v477, 0.0
          %v494 = vmax.f32 %v478, 0.0
          %v495 = vmax.f32 %v479, 0.0
          %v496 = vmax.f32 %v480, 0.0
          %v497 = vmax.f32 %v481, 0.0
          %v498 = vmax.f32 %v482, 0.0
          %499 = vst [vmem:[%s207] sm:$0xff] %v483
          %500 = vst [vmem:[%s207 + $0x8] sm:$0xff] %v484
          %501 = vst [vmem:[%s207 + $0x10] sm:$0xff] %v485
          %502 = vst [vmem:[%s207 + $0x18] sm:$0xff] %v486
          %503 = vst [vmem:[%s207 + $0x20] sm:$0xff] %v487
          %504 = vst [vmem:[%s207 + $0x28] sm:$0xff] %v488
          %505 = vst [vmem:[%s207 + $0x30] sm:$0xff] %v489
          %506 = vst [vmem:[%s207 + $0x38] sm:$0xff] %v490
          %507 = vst [vmem:[%s207 + $0x40] sm:$0xff] %v491
          %508 = vst [vmem:[%s207 + $0x48] sm:$0xff] %v492
          %509 = vst [vmem:[%s207 + $0x50] sm:$0xff] %v493
          %510 = vst [vmem:[%s207 + $0x58] sm:$0xff] %v494
          %511 = vst [vmem:[%s207 + $0x60] sm:$0xff] %v495
          %512 = vst [vmem:[%s207 + $0x68] sm:$0xff] %v496
          %513 = vst [vmem:[%s207 + $0x70] sm:$0xff] %v497
          %514 = vst [vmem:[%s207 + $0x78] sm:$0xff] %v498
        $region44: #{graph_conv_layer.1} parent=31 // pred_fallthru
          _
        %s515 = smul.u32 16, %s21
        %p516 = scmp.lt.s32.totalorder %s515, 63
        %s517 = scalar_select %p516, %s515, 63
        %s518 = smul.addr %s517, 8
        %s519 = scalar_lea.vmem %s3, %s518
        // Predicated region
        $region45: #{graph_conv_layer.1} parent=31 // pred_check
          %p520 = pneg %p117
        $region46: #{graph_conv_layer.1} parent=31 // pred_check_branch
          %522 = sbr.rel (%p520) target = $region48
        $region47: #{graph_conv_layer.1} parent=31 // pred_region
          %s523 = smul.u32 16, %s21
        $region48: #{graph_conv_layer.1} parent=31 // pred_fallthru
          _
      $region32: #{graph_conv_layer.1} parent=5 // pred_fallthru
        _
      %p524 = scmp.le.s32.totalorder 2, %s12
      // Predicated region
      $region49: #{graph_conv_layer.1} parent=5 // pred_check
        %p525 = pneg %p524
      $region50: #{graph_conv_layer.1} parent=5 // pred_check_branch
        %527 = sbr.rel (%p525) target = $region52
      $region51: #{graph_conv_layer.1} parent=5 // pred_region
        %s528 = ssub.s32 %s12, 2
        // Predicated region
        $region53: #{graph_conv_layer.1} parent=51 // pred_check
          %p529 = pneg %p123
        $region54: #{graph_conv_layer.1} parent=51 // pred_check_branch
          %531 = sbr.rel (%p529) target = $region56
        $region55: #{graph_conv_layer.1} parent=51 // pred_region
          %s532 = smul.u32 16, %s23
          %p533 = scmp.lt.s32.totalorder %s532, 63
          %s534 = scalar_select %p533, %s532, 63
          %s535 = smul.addr %s534, 8
          %s536 = scalar_lea.vmem %s3, %s535
        $region56: #{graph_conv_layer.1} parent=51 // pred_fallthru
          _
      $region52: #{graph_conv_layer.1} parent=5 // pred_fallthru
        _
    $region6: #{graph_conv_layer.1} parent=1 // loop_footer
      %s16 = sadd.s32 1, %s12
    $region7: #{graph_conv_layer.1} parent=1 // loop_footer_branch
      %11 = sbr.rel target = $region3
    $region8: #{graph_conv_layer.1} parent=1 // loop_exit
      _
    %537 = vsyncpa [#allocation3], 1
    %s538 = scalar_lea.sflag [#allocation3], 1
    %539 = vsyncpa %s538, 1

</llo_original>
